<compile_context>
chip_gen: v6e
topology: v6e:2x2x1
jax: 0.10.0
libtpu: 0.0.40
codegen_flags: <defaults>
</compile_context>

<pallas_src>
import functools

import jax
import jax.numpy as jnp
from jax.experimental import pallas as pl
from jax.experimental.pallas import tpu as pltpu


def _maxpool_stride1_kernel(lc_ref, lr_ref, x_ref, o_ref, *, w: int):
    """One (bc, Lr) block: separable 2x2 / stride-1 max pool, replicate pad.

    lc_ref / lr_ref: (1, Lr) int32 masks, resident across all grid steps:
      lc[k] != 0  <=>  lane k is the last column of a spatial row (j == W-1)
      lr[k] != 0  <=>  lane k is in the last spatial row of its image (i == H-1)
    """
    x = x_ref[...]                                  # (bc, Lr)
    lr_len = x.shape[1]
    last_col = lc_ref[...] != 0                     # (1, Lr) -> sublane-broadcast
    last_row = lr_ref[...] != 0

    # Horizontal pass: h[k] = max(x[k], x[k+1]); replicate the last column.
    # roll by Lr-1 (== -1 mod Lr) brings x[k+1] to lane k (XLU lane roll).
    x_right = pltpu.roll(x, lr_len - 1, 1)
    h = jnp.maximum(x, jnp.where(last_col, x, x_right))

    # Vertical pass: out[k] = max(h[k], h[k+W]); replicate the last row.
    h_down = pltpu.roll(h, lr_len - w, 1)
    o_ref[...] = jnp.maximum(h, jnp.where(last_row, h, h_down))


def _channel_fold(n, c, l, sm):
    """Channels folded per lane-row so the lane axis becomes a multiple of 128
    (only when it helps and keeps the sublane axis at least one full group)."""
    if l % 128 == 0:
        return 1
    for g in range(2, c + 1):
        if c % g == 0 and (g * l) % 128 == 0 and (n * c) // g >= sm:
            return g
    return 1


def max_pool_stride1(x, *, target_block_bytes=4 * 1024 * 1024):
    """x: (N, C, H, W) -> (N, C, H, W); 2x2 max pool, stride 1, replicate pad."""
    N, C, H, W = x.shape
    L = H * W
    itemsize = x.dtype.itemsize
    sm = max(8, 32 // itemsize)          # native sublane multiple: 8/16/32 for 4/2/1B

    # Lane-dense layout: fold g channels into each lane-row when H*W is not a
    # multiple of 128 (keeps output stores unmasked, the biggest single lever).
    g = _channel_fold(N, C, L, sm)
    Lr = g * L
    R = (N * C) // g
    x_flat = x.reshape(R, Lr)            # contiguous row-major -> free reshape

    # Rows per block: fill ~target_block_bytes, rounded to the dtype's sublane
    # multiple, then capped so the grid keeps >= 2 (ideally >= 4) steps for
    # v7x megacore sharding and DMA/compute pipelining; never exceed R.
    row_bytes = Lr * itemsize
    bc = max(sm, (target_block_bytes // row_bytes // sm) * sm)
    if R >= 4 * sm:
        bc = min(bc, (R // 4 // sm) * sm)
    elif R >= 2 * sm:
        bc = min(bc, (R // 2 // sm) * sm)
    bc = min(bc, R)
    grid = (pl.cdiv(R, bc),)

    # Explicit scoped-VMEM budget covering the real pipeline footprint
    # (in + out double-buffered, plus the two resident masks), capped at 64 MiB
    # so it fits every chip (v7x physical VMEM = 64 MiB per TensorCore).
    block_bytes = bc * row_bytes
    footprint = 4 * block_bytes + 4 * Lr * 4
    vmem_limit = int(min(64 * 1024 * 1024,
                         max(32 * 1024 * 1024, footprint + 4 * 1024 * 1024)))
    # TODO(synk): halo-tile the spatial axis (input block (bc, tH+1, W)) for very
    # large H*W where even `sm` rows exceed ~1/4 of v7x's 64 MiB VMEM; also worth
    # sweeping pipeline_mode=pl.Buffered(3) on v7x's 3.2 TB/s HBM.

    # Replicate-padding edge masks, precomputed once on the host (static given
    # W and H*W); DMA'd once via a constant index_map and kept VMEM-resident.
    k = jnp.arange(Lr, dtype=jnp.int32)
    last_col = ((k % W) == (W - 1)).astype(jnp.int32).reshape(1, Lr)
    last_row = ((k % L) >= (L - W)).astype(jnp.int32).reshape(1, Lr)

    out_flat = pl.pallas_call(
        functools.partial(_maxpool_stride1_kernel, w=W),
        out_shape=jax.ShapeDtypeStruct((R, Lr), x.dtype),
        grid_spec=pltpu.PrefetchScalarGridSpec(
            num_scalar_prefetch=0,
            grid=grid,
            in_specs=[
                pl.BlockSpec((1, Lr), lambda i: (0, 0)),   # last-col mask (resident)
                pl.BlockSpec((1, Lr), lambda i: (0, 0)),   # last-row mask (resident)
                pl.BlockSpec((bc, Lr), lambda i: (i, 0)),  # input rows
            ],
            out_specs=pl.BlockSpec((bc, Lr), lambda i: (i, 0)),
        ),
        compiler_params=pltpu.CompilerParams(
            dimension_semantics=("parallel",),
            vmem_limit_bytes=vmem_limit,
        ),
    )(last_col, last_row, x_flat)

    return out_flat.reshape(N, C, H, W)


def _reference(x):
    # Pure-JAX reference: replicate-pad right/bottom by 1, 2x2 max, stride 1.
    xp = jnp.pad(x, ((0, 0), (0, 0), (0, 1), (0, 1)), mode="edge")
    return jnp.maximum(
        jnp.maximum(xp[:, :, :-1, :-1], xp[:, :, :-1, 1:]),
        jnp.maximum(xp[:, :, 1:, :-1], xp[:, :, 1:, 1:]),
    )


if __name__ == "__main__":
    key = jax.random.PRNGKey(0)
    k1, k2, k3 = jax.random.split(key, 3)

    # Shape implied by the module's usage (NCHW feature map).
    x1 = jax.random.normal(k1, (2, 4, 16, 16), dtype=jnp.float32)
    out1 = jax.block_until_ready(max_pool_stride1(x1))
    assert out1.shape == x1.shape
    assert jnp.array_equal(out1, _reference(x1)), "mismatch vs reference"

    # Multi-block tiled path (small target -> >= 4 grid steps, megacore-friendly).
    x2 = jax.random.normal(k2, (2, 16, 16, 16), dtype=jnp.float32)
    out2 = jax.block_until_ready(
        max_pool_stride1(x2, target_block_bytes=16 * 1024))
    assert jnp.array_equal(out2, _reference(x2)), "mismatch vs reference (tiled)"

    # H*W not a multiple of 128 -> channel-folded lane-dense path (g=2, Lr=128).
    x3 = jax.random.normal(k3, (2, 8, 8, 8), dtype=jnp.float32)
    out3 = jax.block_until_ready(max_pool_stride1(x3))
    assert jnp.array_equal(out3, _reference(x3)), "mismatch vs reference (folded)"

    print("KERNEL_OK")
</pallas_src>

<mosaic_0001>
module attributes {stable_mosaic.version = 11 : i64} {
  func.func @_maxpool_stride1_kernel(%arg0: i32, %arg1: memref<1x256xi32, #tpu.memory_space<vmem>>, %arg2: memref<1x256xi32, #tpu.memory_space<vmem>>, %arg3: memref<8x256xf32, #tpu.memory_space<vmem>>, %arg4: memref<8x256xf32, #tpu.memory_space<vmem>>) attributes {dimension_semantics = [#tpu.dimension_semantics<parallel>], iteration_bounds = array<i64: 1>, scalar_prefetch = 0 : i64, scratch_operands = 0 : i64, tpu.core_type = #tpu.core_type<tc>, window_params = [{pipeline_mode = #tpu.pipeline_mode<synchronous>, transform_indices = @transform_0, window_bounds = array<i64: 1, 256>}, {pipeline_mode = #tpu.pipeline_mode<synchronous>, transform_indices = @transform_1, window_bounds = array<i64: 1, 256>}, {transform_indices = @transform_2, window_bounds = array<i64: 8, 256>}, {transform_indices = @transform_3, window_bounds = array<i64: 8, 256>}]} {
    %c0 = arith.constant 0 : index
    %c0_0 = arith.constant 0 : index
    %0 = vector.load %arg3[%c0, %c0_0] : memref<8x256xf32, #tpu.memory_space<vmem>>, vector<8x256xf32>
    %c0_1 = arith.constant 0 : index
    %c0_2 = arith.constant 0 : index
    %1 = vector.load %arg1[%c0_1, %c0_2] : memref<1x256xi32, #tpu.memory_space<vmem>>, vector<1x256xi32>
    %c0_i32 = arith.constant 0 : i32
    %2 = vector.broadcast %c0_i32 : i32 to vector<1x256xi32>
    %3 = arith.cmpi ne, %1, %2 : vector<1x256xi32>
    %c0_3 = arith.constant 0 : index
    %c0_4 = arith.constant 0 : index
    %4 = vector.load %arg2[%c0_3, %c0_4] : memref<1x256xi32, #tpu.memory_space<vmem>>, vector<1x256xi32>
    %c0_i32_5 = arith.constant 0 : i32
    %5 = vector.broadcast %c0_i32_5 : i32 to vector<1x256xi32>
    %6 = arith.cmpi ne, %4, %5 : vector<1x256xi32>
    %c255_i32 = arith.constant 255 : i32
    %7 = tpu.dynamic_rotate %0 by %c255_i32 dim 1 : vector<8x256xf32>, i32 -> vector<8x256xf32>
    %8 = vector.shape_cast %3 : vector<1x256xi1> to vector<1x256xi1>
    %9 = vector.broadcast %8 : vector<1x256xi1> to vector<8x256xi1>
    %10 = arith.select %9, %0, %7 : vector<8x256xi1>, vector<8x256xf32>
    %11 = arith.maximumf %0, %10 : vector<8x256xf32>
    %c240_i32 = arith.constant 240 : i32
    %12 = tpu.dynamic_rotate %11 by %c240_i32 dim 1 : vector<8x256xf32>, i32 -> vector<8x256xf32>
    %13 = vector.shape_cast %6 : vector<1x256xi1> to vector<1x256xi1>
    %14 = vector.broadcast %13 : vector<1x256xi1> to vector<8x256xi1>
    %15 = arith.select %14, %11, %12 : vector<8x256xi1>, vector<8x256xf32>
    %16 = arith.maximumf %11, %15 : vector<8x256xf32>
    %c0_6 = arith.constant 0 : index
    %c0_7 = arith.constant 0 : index
    %17 = vector.load %arg4[%c0_6, %c0_7] : memref<8x256xf32, #tpu.memory_space<vmem>>, vector<8x256xf32>
    tpu.vector_store %arg4[%c0_6, %c0_7], %16 {strides = array<i32>} : memref<8x256xf32, #tpu.memory_space<vmem>>, vector<8x256xf32>,
    return
  }
  func.func @transform_0(%arg0: i32) -> (i32, i32) {
    %c0_i32 = arith.constant 0 : i32
    %c0_i32_0 = arith.constant 0 : i32
    %c0_i32_1 = arith.constant 0 : i32
    return %c0_i32, %c0_i32_0 : i32, i32
  }
  func.func @transform_1(%arg0: i32) -> (i32, i32) {
    %c0_i32 = arith.constant 0 : i32
    %c0_i32_0 = arith.constant 0 : i32
    %c0_i32_1 = arith.constant 0 : i32
    return %c0_i32, %c0_i32_0 : i32, i32
  }
  func.func @transform_2(%arg0: i32) -> (i32, i32) {
    %c0_i32 = arith.constant 0 : i32
    %c0_i32_0 = arith.constant 0 : i32
    return %arg0, %c0_i32 : i32, i32
  }
  func.func @transform_3(%arg0: i32) -> (i32, i32) {
    %c0_i32 = arith.constant 0 : i32
    %c0_i32_0 = arith.constant 0 : i32
    return %arg0, %c0_i32 : i32, i32
  }
}

</mosaic_0001>

<llo_original>
// kernel: tpu_custom_call.1
$region0: #{tpu_custom_call.1}
  #allocation0 [shape = 'u32[]', space=smem, size = 0x4, offset = 0x4, fixed_abs, tag = 'smem constant byte address 0x4 - core index']
  #allocation1 [shape = 'u32[144,128]{1,0:T(1,128)}', space=vmem, size = 0x12000, scoped, tag = 'internal scratch']
  %s0 = inlined_call_operand.hbm [shape: s32[1,256], index: 0, kind: input, shape index: {}]
  %s1 = inlined_call_operand.hbm [shape: s32[1,256], index: 1, kind: input, shape index: {}]
  %s2 = inlined_call_operand.hbm [shape: f32[8,256], index: 2, kind: input, shape index: {}]
  %s3 = inlined_call_operand.hbm [shape: f32[8,256], index: 3, kind: output, shape index: {}]
  %s4 = sld [smem:[#allocation0]]
  $region34: #{tpu_custom_call.1} parent=0
    _
  %s6 = ssub.s32 1, %s4
  %s7 = scalar_select 0, %s6, %s4
  $region1: #{tpu_custom_call.1} parent=0
    #allocation2 [shape = 'u8[1024]{0}', space=vmem, size = 0x400, scoped, tag = 'input window, operand 0, single buffered']
    #allocation3 [shape = 's32[1]{0}', space=sflag, size = 0x4, scoped, tag = 'scoped memory for tpu_custom_call.1']
    #allocation4 [shape = 's32[1]{0}', space=sflag, size = 0x4, scoped, tag = 'scoped memory for tpu_custom_call.1']
    #allocation5 [shape = 'u8[1024]{0}', space=vmem, size = 0x400, scoped, tag = 'input window, operand 1, single buffered']
    #allocation6 [shape = 's32[1]{0}', space=sflag, size = 0x4, scoped, tag = 'scoped memory for tpu_custom_call.1']
    #allocation7 [shape = 'u8[8192]{0}', space=vmem, size = 0x2000, scoped, tag = 'input window, operand 2, single buffered']
    #allocation8 [shape = 'u8[8192]{0}', space=vmem, size = 0x2000, scoped, tag = 'output window, operand 0, single buffered']
    %8 = vsyncpa [#allocation3], 0
    %9 = vsyncpa [#allocation6], 0
    %10 = vsyncpa [#allocation4], 0
    // Predicated region
    $region2: #{tpu_custom_call.1} parent=1 // pred_check
      _
    $region3: #{tpu_custom_call.1} parent=1 // pred_check_branch
      %12 = sbr.rel (0) target = $region5
    $region4: #{tpu_custom_call.1} parent=1 // pred_region
      %s14 = ssub.s32 32, 32
      %15 = vsyncadd [#allocation3], %s14
      %s17 = sshll.u32 [#allocation2], 4
      %s18 = int_to_ptr.vmem [resolvable:$true] %s17
      %20 = dma.hbm_to_vmem [thread:$0]  %s0, 32, %s18, [#allocation3]
    $region5: #{tpu_custom_call.1} parent=1 // pred_fallthru
      _
    // Predicated region
    $region6: #{tpu_custom_call.1} parent=1 // pred_check
      _
    $region7: #{tpu_custom_call.1} parent=1 // pred_check_branch
      %22 = sbr.rel (0) target = $region9
    $region8: #{tpu_custom_call.1} parent=1 // pred_region
      %s24 = ssub.s32 32, 32
      %25 = vsyncadd [#allocation6], %s24
      %s27 = sshll.u32 [#allocation5], 4
      %s28 = int_to_ptr.vmem [resolvable:$true] %s27
      %30 = dma.hbm_to_vmem [thread:$0]  %s1, 32, %s28, [#allocation6]
    $region9: #{tpu_custom_call.1} parent=1 // pred_fallthru
      _
    // Predicated region
    $region10: #{tpu_custom_call.1} parent=1 // pred_check
      _
    $region11: #{tpu_custom_call.1} parent=1 // pred_check_branch
      %32 = sbr.rel (0) target = $region13
    $region12: #{tpu_custom_call.1} parent=1 // pred_region
      %s34 = ssub.s32 256, 256
      %35 = vsyncadd [#allocation6], %s34
      %s37 = sshll.u32 [#allocation7], 4
      %s38 = int_to_ptr.vmem [resolvable:$true] %s37
      %40 = dma.hbm_to_vmem [thread:$0]  %s2, 256, %s38, [#allocation6]
    $region13: #{tpu_custom_call.1} parent=1 // pred_fallthru
      _
    // Predicated region
    $region14: #{tpu_custom_call.1} parent=1 // pred_check
      _
    $region15: #{tpu_custom_call.1} parent=1 // pred_check_branch
      %42 = sbr.rel (0) target = $region17
    $region16: #{tpu_custom_call.1} parent=1 // pred_region
      %43 = dma.done [#allocation3], 32
    $region17: #{tpu_custom_call.1} parent=1 // pred_fallthru
      _
    // Predicated region
    $region18: #{tpu_custom_call.1} parent=1 // pred_check
      _
    $region19: #{tpu_custom_call.1} parent=1 // pred_check_branch
      %45 = sbr.rel (0) target = $region21
    $region20: #{tpu_custom_call.1} parent=1 // pred_region
      %46 = dma.done [#allocation6], 32
    $region21: #{tpu_custom_call.1} parent=1 // pred_fallthru
      _
    // Predicated region
    $region22: #{tpu_custom_call.1} parent=1 // pred_check
      _
    $region23: #{tpu_custom_call.1} parent=1 // pred_check_branch
      %48 = sbr.rel (0) target = $region25
    $region24: #{tpu_custom_call.1} parent=1 // pred_region
      %49 = dma.done [#allocation6], 256
    $region25: #{tpu_custom_call.1} parent=1 // pred_fallthru
      _
    %v50 = vld [vmem:[#allocation7] sm:$0xff]
    %v51 = vld [vmem:[#allocation7 + $0x8] sm:$0xff]
    %v52 = vld [vmem:[#allocation2] sm:$0x3]
    %vm53 = vcmp.ne.s32.totalorder %v52, 0
    %v54 = vld [vmem:[#allocation5] sm:$0x3]
    %vm55 = vcmp.ne.s32.totalorder %v54, 0
    %56 = vrot.lane.b32.xlu0 %v50, 127
    %v57 = vpop.permute.xlu0 %56
    %58 = vrot.lane.b32.xlu0 %v51, 127
    %v59 = vpop.permute.xlu0 %58
    %v60 = vlaneseq
    %v61 = vand.u32 %v60, 127
    %vm62 = vcmp.lt.s32.totalorder %v61, 127
    %v63 = vsel %vm62, %v57, %v59
    %v64 = vsel %vm62, %v59, %v57
    %v65 = vsel %vm53, 1, 0
    %v66 = vlaneseq
    %v67 = vshrl.u32 %v66, 7
    %v68 = vsub.s32 0, %v67
    %v69 = vrot.slane %v65, %v68
    %v70 = vlaneseq
    %v71 = vshrl.u32 %v70, 7
    %v72 = vsub.s32 1, %v71
    %v73 = vrot.slane %v65, %v72
    %vm74 = vcmp.eq.s32.totalorder %v69, 1
    %vm75 = vcmp.eq.s32.totalorder %v73, 1
    %v76 = vsel %vm74, %v50, %v63
    %v77 = vsel %vm75, %v51, %v64
    %v78 = vmax.f32 %v50, %v76
    %v79 = vmax.f32 %v51, %v77
    %80 = vrot.lane.b32.xlu0 %v78, 112
    %v81 = vpop.permute.xlu0 %80
    %82 = vrot.lane.b32.xlu0 %v79, 112
    %v83 = vpop.permute.xlu0 %82
    %vm84 = vcmp.lt.s32.totalorder %v61, 112
    %v85 = vsel %vm84, %v81, %v83
    %v86 = vsel %vm84, %v83, %v81
    %v87 = vsel %vm55, 1, 0
    %v88 = vlaneseq
    %v89 = vshrl.u32 %v88, 7
    %v90 = vsub.s32 0, %v89
    %v91 = vrot.slane %v87, %v90
    %v92 = vlaneseq
    %v93 = vshrl.u32 %v92, 7
    %v94 = vsub.s32 1, %v93
    %v95 = vrot.slane %v87, %v94
    %vm96 = vcmp.eq.s32.totalorder %v91, 1
    %vm97 = vcmp.eq.s32.totalorder %v95, 1
    %v98 = vsel %vm96, %v78, %v85
    %v99 = vsel %vm97, %v79, %v86
    %v100 = vmax.f32 %v78, %v98
    %v101 = vmax.f32 %v79, %v99
    %102 = vst [vmem:[#allocation8] sm:$0xff] %v100
    %103 = vst [vmem:[#allocation8 + $0x8] sm:$0xff] %v101
    // Predicated region
    $region26: #{tpu_custom_call.1} parent=1 // pred_check
      _
    $region27: #{tpu_custom_call.1} parent=1 // pred_check_branch
      %105 = sbr.rel (0) target = $region29
    $region28: #{tpu_custom_call.1} parent=1 // pred_region
      %s107 = ssub.s32 256, 256
      %108 = vsyncadd [#allocation4], %s107
      %s110 = sshll.u32 [#allocation8], 4
      %s111 = int_to_ptr.vmem [resolvable:$true] %s110
      %113 = dma.vmem_to_hbm [thread:$0]  %s111, 256, %s3, [#allocation4]
    $region29: #{tpu_custom_call.1} parent=1 // pred_fallthru
      _
    // Predicated region
    $region30: #{tpu_custom_call.1} parent=1 // pred_check
      _
    $region31: #{tpu_custom_call.1} parent=1 // pred_check_branch
      %115 = sbr.rel (0) target = $region33
    $region32: #{tpu_custom_call.1} parent=1 // pred_region
      %116 = dma.done [#allocation4], 256
    $region33: #{tpu_custom_call.1} parent=1 // pred_fallthru
      _
    %117 = vsyncpa [#allocation3], 1
    %118 = vsyncpa [#allocation6], 1
    %119 = vsyncpa [#allocation4], 1

</llo_original>
